<compile_context>
chip_gen: v7x
topology: tpu7x:2x2x1
jax: 0.10.0
libtpu: 0.0.40
codegen_flags: <defaults>
</compile_context>

<pallas_src>
import math

import numpy as np
import jax
import jax.numpy as jnp
from jax.experimental import pallas as pl
from jax.experimental.pallas import tpu as pltpu


def _round_up(a, m):
    return ((a + m - 1) // m) * m


def _row_tile(rows, target=512):
    if rows <= target:
        return rows
    start = target - target % 8
    for t in range(start, 7, -8):
        if rows % t == 0:
            return t
    return rows


# --------------------------------------------------------------------------
# erf-approx GELU (A&S 7.1.26) from Mosaic-friendly ops; divide on the EUP.
# --------------------------------------------------------------------------
def _recip(z):
    r = pl.reciprocal(z, approx=True)      # EUP vrcp
    return r * (2.0 - z * r)               # one Newton step -> ~f32 accuracy


def _erf(x):
    a1, a2, a3, a4, a5 = (0.254829592, -0.284496736, 1.421413741,
                          -1.453152027, 1.061405429)
    p = 0.3275911
    sgn = jnp.where(x >= 0.0, 1.0, -1.0)
    ax = jnp.abs(x)
    t = _recip(1.0 + p * ax)
    poly = ((((a5 * t + a4) * t + a3) * t + a2) * t + a1) * t
    return sgn * (1.0 - poly * jnp.exp(-ax * ax))


def _gelu(x):
    return 0.5 * x * (1.0 + _erf(x * (1.0 / math.sqrt(2.0))))


# --------------------------------------------------------------------------
# Kernel 1: TokenEmbedding (circular Conv1d k=3, no bias) folded into ONE matmul
#           per (batch, row-tile) block + PositionalEmbedding add.
# --------------------------------------------------------------------------
def _token_embed_kernel(x_ref, w_ref, pos_ref, o_ref):
    o_ref[0] = jnp.dot(x_ref[0], w_ref[...],
                       preferred_element_type=jnp.float32) + pos_ref[...]


def token_embedding(x, w_tok, pos):
    # x: (B, T, Cin); circular conv taps become a (B, T, 3*Cin) bf16 view.
    B, T, Cin = x.shape
    D = w_tok.shape[-1]
    xcat = jnp.concatenate([jnp.roll(x, 1, axis=1), x, jnp.roll(x, -1, axis=1)],
                           axis=-1).astype(jnp.bfloat16)            # (B, T, 3*Cin)
    w_flat = w_tok.reshape(3 * Cin, D).astype(jnp.bfloat16)
    tm = _row_tile(T)
    out = pl.pallas_call(
        _token_embed_kernel,
        out_shape=jax.ShapeDtypeStruct((B, T, D), jnp.float32),
        grid=(B, T // tm),
        in_specs=[pl.BlockSpec((1, tm, 3 * Cin), lambda b, i: (b, i, 0)),
                  pl.BlockSpec((3 * Cin, D), lambda b, i: (0, 0)),
                  pl.BlockSpec((tm, D), lambda b, i: (i, 0))],       # pos untiled over B
        out_specs=pl.BlockSpec((1, tm, D), lambda b, i: (b, i, 0)),
        compiler_params=pltpu.CompilerParams(
            dimension_semantics=("parallel", "parallel")),
    )(xcat, w_flat, pos)
    return out


# --------------------------------------------------------------------------
# Kernel 2: fused TimesBlock layer, grid = (batch, period).
#   per period step: inception-conv1 (K*K shifted matmuls on a flat bf16 slab)
#   + GELU -> re-pad hidden into a bf16 VMEM scratch -> inception-conv2
#   -> one bulk softmax-weighted accumulate into the resident output block.
#   Step 0 seeds the output block with the residual x; the last step applies
#   the shared LayerNorm in place.
# --------------------------------------------------------------------------
def _make_timesblock_kernel(geoms, *, T, N, hidden, K, k, eps):
    K2 = K * K
    p = K // 2

    def kernel(x_ref, pw_ref, xp_ref, mask_ref, w1_ref, b1_ref, w2_ref, b2_ref,
               g_ref, be_ref, o_ref, hid_ref):
        period_idx = pl.program_id(1)

        @pl.when(period_idx == 0)
        def _init():
            o_ref[0] = x_ref[0]            # residual accumulator lives in the out block

        for i, (H, W, Wp, M_full, w0s, shift) in enumerate(geoms):
            @pl.when(period_idx == i)
            def _branch(i=i, H=H, W=W, Wp=Wp, M_full=M_full, w0s=w0s, shift=shift):
                xpv = xp_ref[0, 0]                      # (R, N) bf16, loaded once
                mask = mask_ref[0, :M_full, :]          # (M_full, 1) f32 valid-col mask

                # ---- conv1: K*K shifted matmuls; first tap initializes the acc.
                acc1 = jnp.dot(xpv[0:M_full, :], w1_ref[0],
                               preferred_element_type=jnp.float32)
                for t in range(1, K2):
                    off = (t // K) * Wp + (t % K)
                    acc1 = acc1 + jnp.dot(xpv[off:off + M_full, :], w1_ref[t],
                                          preferred_element_type=jnp.float32)
                h = (_gelu(acc1 + b1_ref[...]) * mask).astype(jnp.bfloat16)

                # ---- re-pad hidden activation into the bf16 scratch at an
                #      8-aligned offset; only the small halo regions are zeroed.
                tail0 = w0s + M_full
                tail1 = 2 * p * Wp + 2 * p + shift + M_full   # conv2 read limit
                hid_ref[0:w0s, :] = jnp.zeros((w0s, hidden), jnp.bfloat16)
                hid_ref[w0s:w0s + M_full, :] = h
                hid_ref[tail0:tail1, :] = jnp.zeros((tail1 - tail0, hidden),
                                                    jnp.bfloat16)
                hidv = hid_ref[...]

                # ---- conv2
                acc2 = jnp.dot(hidv[shift:shift + M_full, :], w2_ref[0],
                               preferred_element_type=jnp.float32)
                for t in range(1, K2):
                    off = (t // K) * Wp + (t % K) + shift
                    acc2 = acc2 + jnp.dot(hidv[off:off + M_full, :], w2_ref[t],
                                          preferred_element_type=jnp.float32)
                acc2 = acc2 + b2_ref[...]

                # ---- one bulk softmax-weighted combine of the valid rows (trunc to T)
                valid = acc2.reshape(H, Wp, N)[:, :W, :].reshape(H * W, N)[0:T, :]
                wi = pw_ref[0, 0:1, i:i + 1]            # (1, 1)
                o_ref[0] = o_ref[0] + wi * valid

        @pl.when(period_idx == k - 1)
        def _finalize():
            y = o_ref[0]
            mu = jnp.mean(y, axis=-1, keepdims=True)
            yc = y - mu
            var = jnp.mean(yc * yc, axis=-1, keepdims=True)
            o_ref[0] = yc * jax.lax.rsqrt(var + eps) * g_ref[...] + be_ref[...]

    return kernel


def times_block(x, lp, ln_g, ln_b, top_k):
    B, T, N = x.shape
    K2, _, hidden = lp["w1f"].shape
    K = int(round(math.sqrt(K2)))
    p = K // 2

    periods, period_weight = fft_for_period(x, top_k)   # device FFT, tiny host sync
    pw = jax.nn.softmax(period_weight, axis=1).reshape(B, 1, top_k)

    geoms, slab_list, mask_list = [], [], []
    for i in range(top_k):
        period = int(periods[i])
        L = T if T % period == 0 else (T // period + 1) * period
        H, W = L // period, period
        Wp = _round_up(W + 2 * p, 8)                     # aligned flat row stride
        Hp = H + 2 * p
        M_full = H * Wp                                  # conv output rows (mult of 8)
        w0 = p * Wp + p
        w0s = _round_up(w0, 8)                           # aligned hid write offset
        shift = w0s - w0
        geoms.append((H, W, Wp, M_full, w0s, shift))

        xi = x if L == T else jnp.concatenate(
            [x, jnp.zeros((B, L - T, N), x.dtype)], axis=1)
        xi = jnp.pad(xi.reshape(B, H, W, N),
                     ((0, 0), (p, p), (p, Wp - W - p), (0, 0)))
        slab_list.append(xi.reshape(B, Hp * Wp, N).astype(jnp.bfloat16))

        mrow = np.zeros((Wp, 1), np.float32)
        mrow[:W] = 1.0
        mask_list.append(np.tile(mrow, (H, 1)))          # (M_full, 1)

    # common (padded) slab/mask row count and hid scratch size
    R = _round_up(max(s.shape[1] + 2 * p for s in slab_list), 8)
    hid_rows = R + 8

    slab = jnp.stack(
        [jnp.pad(s, ((0, 0), (0, R - s.shape[1]), (0, 0))) for s in slab_list],
        axis=1)                                           # (B, k, R, N) bf16
    mask = jnp.asarray(np.stack(
        [np.pad(m, ((0, R - m.shape[0]), (0, 0))) for m in mask_list], axis=0))

    kern = _make_timesblock_kernel(geoms, T=T, N=N, hidden=hidden,
                                   K=K, k=top_k, eps=1e-5)

    in_specs = [
        pl.BlockSpec((1, T, N), lambda b, i: (b, 0, 0)),        # x (residual), resident
        pl.BlockSpec((1, 1, top_k), lambda b, i: (b, 0, 0)),    # softmax weights
        pl.BlockSpec((1, 1, R, N), lambda b, i: (b, i, 0, 0)),  # one period slab / step
        pl.BlockSpec((1, R, 1), lambda b, i: (i, 0, 0)),        # its valid-column mask
        pl.BlockSpec((K2, N, hidden), lambda b, i: (0, 0, 0)),
        pl.BlockSpec((1, hidden), lambda b, i: (0, 0)),
        pl.BlockSpec((K2, hidden, N), lambda b, i: (0, 0, 0)),
        pl.BlockSpec((1, N), lambda b, i: (0, 0)),
        pl.BlockSpec((1, N), lambda b, i: (0, 0)),
        pl.BlockSpec((1, N), lambda b, i: (0, 0)),
    ]

    # rough per-core VMEM budget (double-buffered slab/mask + resident blocks + scratch)
    est = (3 * (R * N * 2 + R * 4)
           + 2 * T * N * 4
           + top_k * 4
           + 2 * K2 * N * hidden * 2
           + (hidden + 3 * N) * 4
           + hid_rows * hidden * 2)
    vmem_limit = int(min(64 * 2**20, max(16 * 2**20, 2 * est)))

    return pl.pallas_call(
        kern,
        out_shape=jax.ShapeDtypeStruct((B, T, N), jnp.float32),
        grid=(B, top_k),
        in_specs=in_specs,
        out_specs=pl.BlockSpec((1, T, N), lambda b, i: (b, 0, 0)),
        scratch_shapes=[pltpu.VMEM((hid_rows, hidden), jnp.bfloat16)],
        compiler_params=pltpu.CompilerParams(
            dimension_semantics=("parallel", "arbitrary"),
            vmem_limit_bytes=vmem_limit),
    )(x, pw, slab, mask, lp["w1f"], lp["b1"], lp["w2f"], lp["b2"], ln_g, ln_b)


# --------------------------------------------------------------------------
# Kernel 3: head = erf-approx GELU -> flatten (elementwise-invariant) -> Linear,
#           output already 128-lane padded (weights padded once in init_params).
# --------------------------------------------------------------------------
def _head_kernel(x_ref, w_ref, b_ref, o_ref):
    x = _gelu(x_ref[...])
    o_ref[...] = jnp.dot(x.astype(jnp.bfloat16), w_ref[...],
                         preferred_element_type=jnp.float32) + b_ref[...]


def head(x_flat, w_pad, b_pad, num_classes):
    B, _ = x_flat.shape
    Cpad = w_pad.shape[-1]
    out = pl.pallas_call(
        _head_kernel, out_shape=jax.ShapeDtypeStruct((B, Cpad), jnp.float32)
    )(x_flat, w_pad, b_pad)
    return out[:, :num_classes]


# --------------------------------------------------------------------------
# FFT period selection: runs on device; only the k integer period indices are
# brought to host (they determine reshape sizes, same as PyTorch's .cpu().numpy()).
# --------------------------------------------------------------------------
def fft_for_period(x, k):
    # TODO(synk): rfft/top_k stay in XLA (no Pallas FFT); period indices must be
    #             host scalars because they set data-dependent reshape sizes.
    B, T, N = x.shape
    xf = jnp.fft.rfft(x, axis=1)
    amp = jnp.abs(xf)
    freq = amp.mean(axis=0).mean(axis=-1)
    freq = freq.at[0].set(0.0)
    _, idx = jax.lax.top_k(freq, k)
    idx_host = np.asarray(jax.device_get(idx))
    period_weight = amp.mean(axis=-1)[:, idx_host]     # gather at original indices
    periods = T // np.maximum(idx_host, 1)             # clamp only vs. div-by-zero
    return periods, period_weight


# --------------------------------------------------------------------------
# full TimesNet forward
# --------------------------------------------------------------------------
def timesnet_forward(x_enc, params):
    B, T, _ = x_enc.shape
    enc = token_embedding(x_enc, params["w_tok"], params["pos"])     # (B, T, D)
    D = enc.shape[-1]
    for lp in params["layers"]:
        # fused: TimesBlock (convs + combine + residual) + shared LayerNorm
        enc = times_block(enc, lp, params["ln_g"], params["ln_b"], params["top_k"])
    return head(enc.reshape(B, T * D), params["w_proj_pad"], params["b_proj_pad"],
                params["num_classes"])


# --------------------------------------------------------------------------
# deterministic parameter construction
# --------------------------------------------------------------------------
def positional_embedding(T, D):
    position = np.arange(T, dtype=np.float32)[:, None]
    div_term = np.exp(np.arange(0, D, 2, dtype=np.float32)
                      * -(math.log(10000.0) / D))
    pe = np.zeros((T, D), np.float32)
    pe[:, 0::2] = np.sin(position * div_term)
    pe[:, 1::2] = np.cos(position * div_term)
    return jnp.asarray(pe)


def make_inception_params(key, cin, cout, num_kernels):
    # Mean of num_kernels same-padded convs (k = 1,3,...,2K-1) == single conv with the
    # zero-padded, averaged kernel of size 2*(num_kernels-1)+1.  Biases init to 0.
    K = 2 * (num_kernels - 1) + 1
    w = jnp.zeros((K, K, cin, cout), jnp.float32)
    for i in range(num_kernels):
        ksz = 2 * i + 1
        key, sub = jax.random.split(key)
        std = math.sqrt(2.0 / (cout * ksz * ksz))        # kaiming_normal, fan_out, relu
        wi = jax.random.normal(sub, (ksz, ksz, cin, cout), jnp.float32) * std
        off = (K - ksz) // 2
        w = w.at[off:off + ksz, off:off + ksz].add(wi)
    w = w / float(num_kernels)
    b = jnp.zeros((1, cout), jnp.float32)
    return w, b, key


def init_params(key, *, cin, T, D, hidden, num_layers, num_kernels,
                top_k, num_classes):
    params = {}
    key, k_tok = jax.random.split(key)
    std_tok = math.sqrt(2.0 / (1.0 + 0.01 ** 2)) / math.sqrt(cin * 3)
    params["w_tok"] = jax.random.normal(k_tok, (3, cin, D), jnp.float32) * std_tok
    params["pos"] = positional_embedding(T, D)
    K = 2 * (num_kernels - 1) + 1
    layers = []
    for _ in range(num_layers):
        w1, b1, key = make_inception_params(key, D, hidden, num_kernels)
        w2, b2, key = make_inception_params(key, hidden, D, num_kernels)
        layers.append(dict(
            w1f=w1.reshape(K * K, D, hidden).astype(jnp.bfloat16), b1=b1,
            w2f=w2.reshape(K * K, hidden, D).astype(jnp.bfloat16), b2=b2))
    params["layers"] = layers
    # single shared LayerNorm, matching the reference TimesNet (one nn.LayerNorm reused)
    params["ln_g"] = jnp.ones((1, D), jnp.float32)
    params["ln_b"] = jnp.zeros((1, D), jnp.float32)
    key, kw, kb = jax.random.split(key, 3)
    bound = 1.0 / math.sqrt(T * D)
    w_proj = jax.random.uniform(kw, (T * D, num_classes), jnp.float32, -bound, bound)
    b_proj = jax.random.uniform(kb, (1, num_classes), jnp.float32, -bound, bound)
    # precompute 128-lane-padded head weights once (not per forward call)
    Cpad = _round_up(max(num_classes, 1), 128)
    params["w_proj_pad"] = (jnp.zeros((T * D, Cpad), jnp.bfloat16)
                            .at[:, :num_classes].set(w_proj.astype(jnp.bfloat16)))
    params["b_proj_pad"] = (jnp.zeros((1, Cpad), jnp.float32)
                            .at[:, :num_classes].set(b_proj))
    params["num_classes"] = num_classes
    params["top_k"] = top_k
    return params


# --------------------------------------------------------------------------
if __name__ == "__main__":
    B, T, Cin = 2, 16, 4          # batch, sequence_length, input_channels
    D, hidden = 32, 32            # dimension_model, hidden_dim
    num_layers, num_kernels, top_k, num_classes = 2, 3, 3, 2

    key = jax.random.PRNGKey(0)
    key, kx = jax.random.split(key)
    x_enc = jax.random.normal(kx, (B, T, Cin), jnp.float32)

    params = init_params(key, cin=Cin, T=T, D=D, hidden=hidden,
                         num_layers=num_layers, num_kernels=num_kernels,
                         top_k=top_k, num_classes=num_classes)

    out = timesnet_forward(x_enc, params)
    out = jax.block_until_ready(out)
    assert out.shape == (B, num_classes) and out.dtype == jnp.float32
    print("KERNEL_OK")
</pallas_src>

<mosaic_0001>
module attributes {stable_mosaic.version = 11 : i64} {
  func.func @_token_embed_kernel(%arg0: i32, %arg1: i32, %arg2: memref<1x16x12xbf16, #tpu.memory_space<vmem>>, %arg3: memref<12x32xbf16, #tpu.memory_space<vmem>>, %arg4: memref<16x32xf32, #tpu.memory_space<vmem>>, %arg5: memref<1x16x32xf32, #tpu.memory_space<vmem>>) attributes {dimension_semantics = [#tpu.dimension_semantics<parallel>, #tpu.dimension_semantics<parallel>], iteration_bounds = array<i64: 2, 1>, scalar_prefetch = 0 : i64, scratch_operands = 0 : i64, tpu.core_type = #tpu.core_type<tc>, window_params = [{transform_indices = @transform_0, window_bounds = array<i64: 1, 16, 12>}, {pipeline_mode = #tpu.pipeline_mode<synchronous>, transform_indices = @transform_1, window_bounds = array<i64: 12, 32>}, {transform_indices = @transform_2, window_bounds = array<i64: 16, 32>}, {transform_indices = @transform_3, window_bounds = array<i64: 1, 16, 32>}]} {
    %c0 = arith.constant 0 : index
    %c0_0 = arith.constant 0 : index
    %c0_1 = arith.constant 0 : index
    %0 = vector.load %arg2[%c0, %c0_0, %c0_1] : memref<1x16x12xbf16, #tpu.memory_space<vmem>>, vector<1x16x12xbf16>
    %1 = vector.shape_cast %0 : vector<1x16x12xbf16> to vector<16x12xbf16>
    %c0_2 = arith.constant 0 : index
    %c0_3 = arith.constant 0 : index
    %2 = vector.load %arg3[%c0_2, %c0_3] : memref<12x32xbf16, #tpu.memory_space<vmem>>, vector<12x32xbf16>
    %cst = arith.constant dense<0.000000e+00> : vector<16x32xf32>
    %3 = tpu.matmul %1, %2, %cst {dimension_numbers = #tpu.dot_dimension_numbers<[1], [0], [0], [1], [0, 0, 1, 1], [], []>} : vector<16x12xbf16>, vector<12x32xbf16>, vector<16x32xf32> -> vector<16x32xf32>
    %c0_4 = arith.constant 0 : index
    %c0_5 = arith.constant 0 : index
    %4 = vector.load %arg4[%c0_4, %c0_5] : memref<16x32xf32, #tpu.memory_space<vmem>>, vector<16x32xf32>
    %5 = arith.addf %3, %4 : vector<16x32xf32>
    %c0_6 = arith.constant 0 : index
    %c0_7 = arith.constant 0 : index
    %c0_8 = arith.constant 0 : index
    %6 = vector.load %arg5[%c0_6, %c0_7, %c0_8] : memref<1x16x32xf32, #tpu.memory_space<vmem>>, vector<1x16x32xf32>
    %7 = vector.shape_cast %6 : vector<1x16x32xf32> to vector<16x32xf32>
    %8 = vector.shape_cast %5 : vector<16x32xf32> to vector<1x16x32xf32>
    tpu.vector_store %arg5[%c0_6, %c0_7, %c0_8], %8 {strides = array<i32>} : memref<1x16x32xf32, #tpu.memory_space<vmem>>, vector<1x16x32xf32>,
    return
  }
  func.func @transform_0(%arg0: i32, %arg1: i32) -> (i32, i32, i32) {
    %c0_i32 = arith.constant 0 : i32
    %c0_i32_0 = arith.constant 0 : i32
    return %arg0, %arg1, %c0_i32 : i32, i32, i32
  }
  func.func @transform_1(%arg0: i32, %arg1: i32) -> (i32, i32) {
    %c0_i32 = arith.constant 0 : i32
    %c0_i32_0 = arith.constant 0 : i32
    %c0_i32_1 = arith.constant 0 : i32
    return %c0_i32, %c0_i32_0 : i32, i32
  }
  func.func @transform_2(%arg0: i32, %arg1: i32) -> (i32, i32) {
    %c0_i32 = arith.constant 0 : i32
    %c0_i32_0 = arith.constant 0 : i32
    return %arg1, %c0_i32 : i32, i32
  }
  func.func @transform_3(%arg0: i32, %arg1: i32) -> (i32, i32, i32) {
    %c0_i32 = arith.constant 0 : i32
    %c0_i32_0 = arith.constant 0 : i32
    return %arg0, %arg1, %c0_i32 : i32, i32, i32
  }
}

</mosaic_0001>

<llo_original>
// kernel: tpu_custom_call.1
$region0: #{tpu_custom_call.1}
  #allocation0 [shape = 'u32[]', space=smem, size = 0x4, offset = 0x4, fixed_abs, tag = 'smem constant byte address 0x4 - core index']
  #allocation1 [shape = 'u32[144,128]{1,0:T(1,128)}', space=vmem, size = 0x12000, scoped, tag = 'internal scratch']
  %s0 = inlined_call_operand.vmem [shape: bf16[2,16,12], index: 0, kind: input, shape index: {}]
  %s1 = inlined_call_operand.vmem [shape: bf16[12,32], index: 1, kind: input, shape index: {}]
  %s2 = inlined_call_operand.vmem [shape: f32[16,32], index: 2, kind: input, shape index: {}]
  %s3 = inlined_call_operand.hbm [shape: f32[2,16,32], index: 3, kind: output, shape index: {}]
  %s4 = sld [smem:[#allocation0]]
  $region45: #{tpu_custom_call.1} parent=0
    _
  %s6 = ssub.s32 1, %s4
  %s7 = scalar_select 0, %s6, %s4
  $region1: #{tpu_custom_call.1} parent=0
    #allocation2 [shape = 'u8[16384]{0}', space=vmem, size = 0x4000, scoped, tag = 'output window, operand 0']
    #allocation3 [shape = 's32[2]{0}', space=sflag, size = 0x8, scoped, tag = 'scoped memory for tpu_custom_call.1']
    %8 = vsyncpa [#allocation3], 0
    %s9 = scalar_lea.sflag [#allocation3], 1
    %10 = vsyncpa %s9, 0
    loop: start=0, step=1, limit=4
    $region2: #{tpu_custom_call.1} parent=1 // loop_pre_header
      _
    $region3: #{tpu_custom_call.1} parent=1 // loop_header
      %s12 = sphi 0, %s16
      %p13 = scmp.ge.s32.totalorder %s12, 4
      %s19 = sphi 0, %s31
      %s20 = sphi 0, %s27
      %s21 = sphi 0, %s19
      %s22 = sphi 0, %s20
      %s23 = sphi 0, %s21
      %s24 = sphi 0, %s22
      %s36 = sphi 0, %s38
      %s39 = sphi 0, %s36
      %s40 = sphi 0, %s39
      %s56 = sphi 0, %s40
      %s60 = sphi 0, %s60
      %s62 = sphi 0, %s60
      %s63 = sphi 0, %s62
      %s77 = sphi 0, %s63
      %s83 = sphi 0, %s85
      %s86 = sphi 0, %s83
      %s87 = sphi 0, %s86
      %s103 = sphi 0, %s87
      %s111 = sphi 0, %s113
      %s114 = sphi 0, %s111
      %s115 = sphi 0, %s114
      %s131 = sphi 0, %s115
    $region4: #{tpu_custom_call.1} parent=1 // loop_header_branch
      %15 = sbr.rel (%p13) target = $region8
    $region5: #{tpu_custom_call.1} parent=1 // loop_body
      %s17 = ssub.s32 %s12, 1
      %s18 = ssub.s32 %s12, 2
      %s25 = sadd.s32 1, %s20
      %p26 = scmp.ge.s32.totalorder %s25, 1
      %s27 = scalar_select %p26, 0, %s25
      %s28 = sadd.s32 1, %s19
      %s29 = scalar_select %p26, %s28, %s19
      %p30 = scmp.ge.s32.totalorder %s29, 2
      %s31 = scalar_select %p30, 0, %s29
      %s32 = ssub.s32 %s19, %s31
      %s33 = ssub.s32 %s20, %s27
      %s34 = sor.u32 %s32, %s33
      %p35 = scmp.eq.s32.totalorder %s34, 0
      %s37 = sadd.s32 %s36, 1
      %s38 = scalar_select %p35, %s36, %s37
      %p41 = pneg %p35
      %p42 = scmp.eq.s32.totalorder %s12, 1
      %p43 = por %p41, %p42
      %p44 = scmp.ne.s32.totalorder %s36, %s39
      %p45 = scmp.eq.s32.totalorder %s12, 0
      %p46 = por %p44, %p45
      %p47 = scmp.ne.s32.totalorder %s36, %s39
      %p48 = scmp.eq.s32.totalorder %s17, 1
      %p49 = por %p47, %p48
      %p50 = scmp.ne.s32.totalorder %s39, %s40
      %p51 = scmp.eq.s32.totalorder %s17, 0
      %p52 = por %p50, %p51
      %p53 = scmp.ne.s32.totalorder %s39, %s40
      %p54 = scmp.eq.s32.totalorder %s18, 1
      %p55 = por %p53, %p54
      %p57 = scmp.ne.s32.totalorder %s40, %s56
      %p58 = scmp.eq.s32.totalorder %s18, 0
      %p59 = por %p57, %p58
      %s61 = sadd.s32 %s60, 1
      %p64 = scmp.eq.s32.totalorder %s12, 1
      %p65 = scmp.ne.s32.totalorder %s60, %s62
      %p66 = scmp.eq.s32.totalorder %s12, 0
      %p67 = por %p65, %p66
      %p68 = scmp.ne.s32.totalorder %s60, %s62
      %p69 = scmp.eq.s32.totalorder %s17, 1
      %p70 = por %p68, %p69
      %p71 = scmp.ne.s32.totalorder %s62, %s63
      %p72 = scmp.eq.s32.totalorder %s17, 0
      %p73 = por %p71, %p72
      %p74 = scmp.ne.s32.totalorder %s62, %s63
      %p75 = scmp.eq.s32.totalorder %s18, 1
      %p76 = por %p74, %p75
      %p78 = scmp.ne.s32.totalorder %s63, %s77
      %p79 = scmp.eq.s32.totalorder %s18, 0
      %p80 = por %p78, %p79
      %s81 = ssub.s32 %s20, %s27
      %p82 = scmp.eq.s32.totalorder %s81, 0
      %s84 = sadd.s32 %s83, 1
      %s85 = scalar_select %p82, %s83, %s84
      %p88 = pneg %p82
      %p89 = scmp.eq.s32.totalorder %s12, 1
      %p90 = por %p88, %p89
      %p91 = scmp.ne.s32.totalorder %s83, %s86
      %p92 = scmp.eq.s32.totalorder %s12, 0
      %p93 = por %p91, %p92
      %p94 = scmp.ne.s32.totalorder %s83, %s86
      %p95 = scmp.eq.s32.totalorder %s17, 1
      %p96 = por %p94, %p95
      %p97 = scmp.ne.s32.totalorder %s86, %s87
      %p98 = scmp.eq.s32.totalorder %s17, 0
      %p99 = por %p97, %p98
      %p100 = scmp.ne.s32.totalorder %s86, %s87
      %p101 = scmp.eq.s32.totalorder %s18, 1
      %p102 = por %p100, %p101
      %p104 = scmp.ne.s32.totalorder %s87, %s103
      %p105 = scmp.eq.s32.totalorder %s18, 0
      %p106 = por %p104, %p105
      %s107 = ssub.s32 %s19, %s31
      %s108 = ssub.s32 %s20, %s27
      %s109 = sor.u32 %s107, %s108
      %p110 = scmp.eq.s32.totalorder %s109, 0
      %s112 = sadd.s32 %s111, 1
      %s113 = scalar_select %p110, %s111, %s112
      %p116 = pneg %p110
      %p117 = scmp.eq.s32.totalorder %s12, 1
      %p118 = por %p116, %p117
      %p119 = scmp.ne.s32.totalorder %s111, %s114
      %p120 = scmp.eq.s32.totalorder %s12, 0
      %p121 = por %p119, %p120
      %p122 = scmp.ne.s32.totalorder %s111, %s114
      %p123 = scmp.eq.s32.totalorder %s17, 1
      %p124 = por %p122, %p123
      %p125 = scmp.ne.s32.totalorder %s114, %s115
      %p126 = scmp.eq.s32.totalorder %s17, 0
      %p127 = por %p125, %p126
      %p128 = scmp.ne.s32.totalorder %s114, %s115
      %p129 = scmp.eq.s32.totalorder %s18, 1
      %p130 = por %p128, %p129
      %p132 = scmp.ne.s32.totalorder %s115, %s131
      %p133 = scmp.eq.s32.totalorder %s18, 0
      %p134 = por %p132, %p133
      %p135 = scmp.le.s32.totalorder 1, %s12
      %p136 = scmp.lt.s32.totalorder %s12, 3
      %p137 = pnand %p135, %p136
      %p138 = pneg %p137
      // Predicated region
      $region9: #{tpu_custom_call.1} parent=5 // pred_check
        _
      $region10: #{tpu_custom_call.1} parent=5 // pred_check_branch
        %140 = sbr.rel (%p137) target = $region12
      $region11: #{tpu_custom_call.1} parent=5 // pred_region
        %s141 = ssub.s32 %s12, 1
        // Predicated region
        $region13: #{tpu_custom_call.1} parent=11 // pred_check
          %p142 = pneg %p73
        $region14: #{tpu_custom_call.1} parent=11 // pred_check_branch
          %144 = sbr.rel (%p142) target = $region16
        $region15: #{tpu_custom_call.1} parent=11 // pred_region
          _
        $region16: #{tpu_custom_call.1} parent=11 // pred_fallthru
          _
        // Predicated region
        $region17: #{tpu_custom_call.1} parent=11 // pred_check
          %p145 = pneg %p99
        $region18: #{tpu_custom_call.1} parent=11 // pred_check_branch
          %147 = sbr.rel (%p145) target = $region20
        $region19: #{tpu_custom_call.1} parent=11 // pred_region
          %s148 = smul.u32 2, %s22
          %p149 = scmp.lt.s32.totalorder %s148, 1
          %s150 = scalar_select %p149, %s148, 1
          %s151 = smul.addr %s150, 8
          %s152 = scalar_lea.vmem %s2, %s151
          %s153 = smul.u32 2, %s22
        $region20: #{tpu_custom_call.1} parent=11 // pred_fallthru
          _
      $region12: #{tpu_custom_call.1} parent=5 // pred_fallthru
        _
      %p154 = scmp.lt.s32.totalorder %s12, 2
      // Predicated region
      $region21: #{tpu_custom_call.1} parent=5 // pred_check
        %p155 = pneg %p154
      $region22: #{tpu_custom_call.1} parent=5 // pred_check_branch
        %157 = sbr.rel (%p155) target = $region24
      $region23: #{tpu_custom_call.1} parent=5 // pred_region
        // Predicated region
        $region25: #{tpu_custom_call.1} parent=23 // pred_check
          %p158 = pneg %p46
        $region26: #{tpu_custom_call.1} parent=23 // pred_check_branch
          %160 = sbr.rel (%p158) target = $region28
        $region27: #{tpu_custom_call.1} parent=23 // pred_region
          %s161 = smul.u32 2, %s20
          %p162 = scmp.lt.s32.totalorder %s19, 1
          %s163 = scalar_select %p162, %s19, 1
          %p164 = scmp.lt.s32.totalorder %s161, 1
          %s165 = scalar_select %p164, %s161, 1
          %s166 = smul.addr %s163, 2
          %s167 = sadd.s32 %s165, %s166
          %s168 = smul.addr %s167, 4
          %s169 = scalar_lea.vmem %s0, %s168
          %s170 = smul.u32 2, %s20
        $region28: #{tpu_custom_call.1} parent=23 // pred_fallthru
          _
      $region24: #{tpu_custom_call.1} parent=5 // pred_fallthru
        _
      %p171 = scmp.le.s32.totalorder 1, %s12
      %p172 = scmp.lt.s32.totalorder %s12, 3
      %p173 = pnand %p171, %p172
      %p174 = pneg %p173
      // Predicated region
      $region29: #{tpu_custom_call.1} parent=5 // pred_check
        _
      $region30: #{tpu_custom_call.1} parent=5 // pred_check_branch
        %176 = sbr.rel (%p173) target = $region32
      $region31: #{tpu_custom_call.1} parent=5 // pred_region
        %s177 = ssub.s32 %s12, 1
        %s178 = smul.u32 2, %s22
        %p179 = scmp.lt.s32.totalorder %s21, 1
        %s180 = scalar_select %p179, %s21, 1
        %p181 = scmp.lt.s32.totalorder %s178, 1
        %s182 = scalar_select %p181, %s178, 1
        %s183 = smul.addr %s180, 2
        %s184 = sadd.s32 %s182, %s183
        %s185 = smul.addr %s184, 4
        %s186 = scalar_lea.vmem %s0, %s185
        %p187 = pneg %p52
        %p188 = pneg %p49
        %p189 = pneg %p73
        %p190 = pneg %p70
        %s191 = smul.u32 2, %s22
        %p192 = scmp.lt.s32.totalorder %s191, 1
        %s193 = scalar_select %p192, %s191, 1
        %s194 = smul.addr %s193, 8
        %s195 = scalar_lea.vmem %s2, %s194
        %p196 = pneg %p99
        %p197 = pneg %p96
        %p198 = pneg %p127
        %p199 = pneg %p124
        %s200 = sand.u32 %s114, 1
        %s201 = scalar_lea.sflag [#allocation3], %s200
        %s202 = sand.u32 %s114, 1
        %s203 = smul.addr %s202, 16
        %s204 = scalar_lea.vmem [#allocation2], %s203
        %s205 = smul.u32 2, %s22
        %p206 = scmp.lt.s32.totalorder %s21, 1
        %s207 = scalar_select %p206, %s21, 1
        %p208 = scmp.lt.s32.totalorder %s205, 1
        %s209 = scalar_select %p208, %s205, 1
        %s210 = smul.addr %s207, 2
        %s211 = sadd.s32 %s209, %s210
        %s212 = smul.addr %s211, 4
        %s213 = scalar_lea.vmem %s0, %s212
        %s214 = smul.u32 2, %s22
        %s215 = smul.u32 2, %s22
        %p216 = scmp.lt.s32.totalorder %s215, 1
        %s217 = scalar_select %p216, %s215, 1
        %s218 = smul.addr %s217, 8
        %s219 = scalar_lea.vmem %s2, %s218
        %s220 = smul.u32 2, %s22
        %s221 = smul.u32 2, %s22
        %v223 = vld [vmem:[%s213] sm:$0xf]
        %v224 = vld [vmem:[%s213 + $0x4] sm:$0xf]
        %v225 = vld [vmem:[%s1] sm:$0xf]
        %v226 = vld [vmem:[%s1 + $0x4] sm:$0x3]
        %v227 = vld [vmem:[%s219] sm:$0xff]
        %v228 = vld [vmem:[%s219 + $0x8] sm:$0xff]
        %v231 = vunpack.c.l.b16 %v223
        %v232 = vunpack.c.l.b16 %v224
        %v233 = vpack.c.b16 %v232, %v231
        %v236 = vunpack.c.l.b16 %v225
        %v237 = vunpack.c.l.b16 %v226
        %v238 = vpack.c.b16 %v237, %v236
        %vm239 = vcmask 97280
        %v241 = vsel %vm239, %v233, 0
        %vm243 = vcmask 1045504
        %v245 = vsel %vm243, %v238, 0
        %247 = vmatprep.subr.bf16.mxu0 0
        %248 = vmatpush1.bf16.msra.mxu0 %v245
        %249 = vmatprep.subr.bf16.mxu0 0
        %250 = vmatpush1.bf16.msra.mxu0 0
        %251 = vmatprep.subr.bf16.mxu0 0
        %252 = vmatpush1.bf16.msra.mxu0 0
        %253 = vmatprep.subr.bf16.mxu0 0
        %254 = vmatpush1.bf16.msra.mxu0 0
        %255 = vmatprep.subr.bf16.mxu0 0
        %256 = vmatpush1.bf16.msra.mxu0 0
        %257 = vmatprep.subr.bf16.mxu0 0
        %258 = vmatpush1.bf16.msra.mxu0 0
        %259 = vmatprep.subr.bf16.mxu0 0
        %260 = vmatpush1.bf16.msra.mxu0 0
        %261 = vmatprep.subr.bf16.mxu0 0
        %262 = vmatpush1.bf16.msra.mxu0 0
        %263 = vmatprep.subr.bf16.mxu0 0
        %264 = vmatpush1.bf16.msra.mxu0 0
        %265 = vmatprep.subr.bf16.mxu0 0
        %266 = vmatpush1.bf16.msra.mxu0 0
        %267 = vmatprep.subr.bf16.mxu0 0
        %268 = vmatpush1.bf16.msra.mxu0 0
        %269 = vmatprep.subr.bf16.mxu0 0
        %270 = vmatpush1.bf16.msra.mxu0 0
        %271 = vmatprep.subr.bf16.mxu0 0
        %272 = vmatpush1.bf16.msra.mxu0 0
        %273 = vmatprep.subr.bf16.mxu0 0
        %274 = vmatpush1.bf16.msra.mxu0 0
        %275 = vmatprep.subr.bf16.mxu0 0
        %276 = vmatpush1.bf16.msra.mxu0 0
        %277 = vmatprep.subr.bf16.mxu0 0
        %278 = vmatpush1.bf16.msra.mxu0 0
        %279 = vmatprep.mubr.bf16.mxu0 0
        %280 = vmatmul.mubr.bf16.gmra.mrb[0].mxu0 %v241
        %v281 = vpop.f32.mrb[0].mxu0
        %v282 = vadd.f32 %v227, %v281
        %v283 = vpop.f32.mrb[0].mxu0
        %v284 = vpop.f32.mrb[0].mxu0
        %v285 = vadd.f32 %v228, %v284
        %v286 = vpop.f32.mrb[0].mxu0
        %287 = vdwg.mxu0
        %vm288 = vcmask 261120
        %289 = vst.msk [vmem:[%s204] sm:$0xff] %vm288, %v282
        %290 = vst.msk [vmem:[%s204 + $0x8] sm:$0xff] %vm288, %v285
        %s291 = sand.u32 %s114, 1
        %s292 = scalar_lea.sflag [#allocation3], %s291
        %s293 = sand.u32 %s114, 1
        %s294 = smul.addr %s293, 16
        %s295 = scalar_lea.vmem [#allocation2], %s294
        // Predicated region
        $region33: #{tpu_custom_call.1} parent=31 // pred_check
          %p296 = pneg %p124
        $region34: #{tpu_custom_call.1} parent=31 // pred_check_branch
          %298 = sbr.rel (%p296) target = $region36
        $region35: #{tpu_custom_call.1} parent=31 // pred_region
          %s299 = smul.u32 2, %s22
          %s301 = ssub.s32 256, 256
          %302 = vsyncadd %s292, %s301
          %s303 = smul.addr %s21, 2
          %s304 = sadd.s32 %s299, %s303
          %s305 = smul.addr %s304, 128
          %s306 = scalar_lea.hbm %s3, %s305
          %s307 = sshll.u32 %s295, 4
          %s308 = int_to_ptr.vmem [resolvable:$true] %s307
          %313 = dma.vmem_to_hbm [thread:$0]  %s308, 256, %s306, %s292, 128, 128, 8
        $region36: #{tpu_custom_call.1} parent=31 // pred_fallthru
          _
      $region32: #{tpu_custom_call.1} parent=5 // pred_fallthru
        _
      %p314 = scmp.le.s32.totalorder 2, %s12
      // Predicated region
      $region37: #{tpu_custom_call.1} parent=5 // pred_check
        %p315 = pneg %p314
      $region38: #{tpu_custom_call.1} parent=5 // pred_check_branch
        %317 = sbr.rel (%p315) target = $region40
      $region39: #{tpu_custom_call.1} parent=5 // pred_region
        %s318 = ssub.s32 %s12, 2
        // Predicated region
        $region41: #{tpu_custom_call.1} parent=39 // pred_check
          %p319 = pneg %p130
        $region42: #{tpu_custom_call.1} parent=39 // pred_check_branch
          %321 = sbr.rel (%p319) target = $region44
        $region43: #{tpu_custom_call.1} parent=39 // pred_region
          %s322 = sand.u32 %s115, 1
          %s323 = scalar_lea.sflag [#allocation3], %s322
          %s324 = sand.u32 %s115, 1
          %s325 = smul.addr %s324, 16
          %s326 = scalar_lea.vmem [#allocation2], %s325
          %327 = dma.done %s323, 256
        $region44: #{tpu_custom_call.1} parent=39 // pred_fallthru
          _
      $region40: #{tpu_custom_call.1} parent=5 // pred_fallthru
        _
    $region6: #{tpu_custom_call.1} parent=1 // loop_footer
      %s16 = sadd.s32 1, %s12
    $region7: #{tpu_custom_call.1} parent=1 // loop_footer_branch
      %11 = sbr.rel target = $region3
    $region8: #{tpu_custom_call.1} parent=1 // loop_exit
      _
    %328 = vsyncpa [#allocation3], 1
    %s329 = scalar_lea.sflag [#allocation3], 1
    %330 = vsyncpa %s329, 1

</llo_original>
